<compile_context>
chip_gen: v5e
topology: v5e:2x2
jax: 0.10.0
libtpu: 0.0.40
codegen_flags: <defaults>
</compile_context>

<pallas_src>
import functools

import jax
import jax.numpy as jnp
from jax.experimental import pallas as pl
from jax.experimental.pallas import tpu as pltpu


OUT_LANES = 128  # lane-dense packed output width


# ----------------------------- Pallas kernel ------------------------------- #
def fused_actor_critic_kernel(
    x_ref,      # (TB, S)   state tile
    g_ref,      # (TB, A)   pre-sampled Gumbel noise
    w1_ref,     # (S, H)    fused layer-1 weight  [actor | critic]
    w2_ref,     # (H, H)    fused layer-2 weight  (block diagonal)
    w3_ref,     # (H, H)    fused head weight     (cols 0..A-1 logits, col A value)
    b_ref,      # (3, H)    fused biases (rows = layers)
    out_ref,    # (TB, 128) packed output: [action, log_prob, entropy, value, 0...]
    *,
    action_size: int,
):
    A = action_size
    x = x_ref[...].astype(jnp.float32)
    b = b_ref[...]

    # --- fused actor+critic MLP: 3 matmuls instead of 6 -------------------- #
    h1 = jnp.maximum(
        jnp.dot(x, w1_ref[...], preferred_element_type=jnp.float32) + b[0:1, :], 0.0
    )
    h2 = jnp.maximum(
        jnp.dot(h1, w2_ref[...], preferred_element_type=jnp.float32) + b[1:2, :], 0.0
    )
    out3 = jnp.dot(h2, w3_ref[...], preferred_element_type=jnp.float32) + b[2:3, :]

    logits = out3[:, :A]            # (TB, A)
    value = out3[:, A : A + 1]      # (TB, 1)

    # --- softmax(dim=1), numerically stable -------------------------------- #
    m = jnp.max(logits, axis=-1, keepdims=True)
    shifted = logits - m
    exps = jnp.exp(shifted)
    denom = jnp.sum(exps, axis=-1, keepdims=True)
    probs = exps / denom
    logp = shifted - jnp.log(denom)            # log-softmax

    # --- Categorical: Gumbel-max sample, log_prob, entropy ----------------- #
    scores = logp + g_ref[...]
    TB = logits.shape[0]
    lane = jax.lax.broadcasted_iota(jnp.int32, (TB, A), 1)
    smax = jnp.max(scores, axis=-1, keepdims=True)
    action = jnp.max(jnp.where(scores >= smax, lane, -1), axis=-1, keepdims=True)
    log_prob = jnp.sum(jnp.where(lane == action, logp, 0.0), axis=-1, keepdims=True)
    entropy = -jnp.sum(probs * logp, axis=-1, keepdims=True)

    # --- single lane-dense packed output ----------------------------------- #
    col = jax.lax.broadcasted_iota(jnp.int32, out_ref.shape, 1)
    action_f = action.astype(jnp.float32)      # small ints are exact in f32
    packed = jnp.where(
        col == 0, action_f,
        jnp.where(col == 1, log_prob,
                  jnp.where(col == 2, entropy,
                            jnp.where(col == 3, value, 0.0))))
    out_ref[...] = packed


# ------------------------------ Wrapper ------------------------------------ #
def actor_critic_forward(state, packed_params, key):
    """Returns ((action, log_prob, entropy), value) matching the torch module.

    `key` must be a fresh jax.random key every call (drives Categorical sampling).
    """
    w1 = packed_params["w1"]
    w2 = packed_params["w2"]
    w3 = packed_params["w3"]
    bias = packed_params["bias"]
    A = packed_params["action_size"]

    B, S = state.shape

    # pad batch to a multiple of 8 (sublane); tile at <=256 rows, grid over batch
    Bp = max(8, -(-B // 8) * 8)
    if Bp <= 256:
        tile_b = Bp
    else:
        tile_b = 256
        Bp = -(-Bp // tile_b) * tile_b
    if Bp != B:
        state = jnp.pad(state, ((0, Bp - B), (0, 0)))

    gumbel = jax.random.gumbel(key, (Bp, A), dtype=jnp.float32)

    grid = (Bp // tile_b,)

    packed_out = pl.pallas_call(
        functools.partial(fused_actor_critic_kernel, action_size=A),
        out_shape=jax.ShapeDtypeStruct((Bp, OUT_LANES), jnp.float32),
        grid=grid,
        in_specs=[
            pl.BlockSpec((tile_b, S), lambda i: (i, 0)),     # state tile
            pl.BlockSpec((tile_b, A), lambda i: (i, 0)),     # gumbel tile
            pl.BlockSpec(w1.shape, lambda i: (0, 0)),        # fused weights: full blocks
            pl.BlockSpec(w2.shape, lambda i: (0, 0)),
            pl.BlockSpec(w3.shape, lambda i: (0, 0)),
            pl.BlockSpec(bias.shape, lambda i: (0, 0)),
        ],
        out_specs=pl.BlockSpec((tile_b, OUT_LANES), lambda i: (i, 0)),
        compiler_params=pltpu.CompilerParams(dimension_semantics=("parallel",)),
    )(state, gumbel, w1, w2, w3, bias)

    packed_out = packed_out[:B]
    action = packed_out[:, 0].astype(jnp.int32)
    log_prob = packed_out[:, 1]
    entropy = packed_out[:, 2]
    value = packed_out[:, 3:4]
    return (action, log_prob, entropy), value


# --------------------------- Parameter init -------------------------------- #
def _orthogonal(key, out_dim, in_dim, scale=1.0):
    """Mimics nn.init.orthogonal_ for a (out_dim, in_dim) weight; returns (in, out)."""
    big, small = max(out_dim, in_dim), min(out_dim, in_dim)
    a = jax.random.normal(key, (big, small), dtype=jnp.float32)
    q, r = jnp.linalg.qr(a)
    q = q * jnp.sign(jnp.diagonal(r))
    if out_dim < in_dim:
        w = q.T[:out_dim, :]
    else:
        w = q[:out_dim, :in_dim]
    w = scale * w
    # stored transposed so the kernel computes x @ W  (== torch's x @ W.T)
    return jnp.asarray(w.T, dtype=jnp.float32)


def make_params(key, state_size, action_size, h_actor, h_critic):
    keys = jax.random.split(key, 6)
    actor = {
        "w1": _orthogonal(keys[0], h_actor[0], state_size),
        "b1": jnp.zeros((h_actor[0],), jnp.float32),
        "w2": _orthogonal(keys[1], h_actor[1], h_actor[0]),
        "b2": jnp.zeros((h_actor[1],), jnp.float32),
        "w3": _orthogonal(keys[2], action_size, h_actor[1]),
        "b3": jnp.zeros((action_size,), jnp.float32),
    }
    critic = {
        "w1": _orthogonal(keys[3], h_critic[0], state_size),
        "b1": jnp.zeros((h_critic[0],), jnp.float32),
        "w2": _orthogonal(keys[4], h_critic[1], h_critic[0]),
        "b2": jnp.zeros((h_critic[1],), jnp.float32),
        "w3": _orthogonal(keys[5], 1, h_critic[1]),
        "b3": jnp.zeros((1,), jnp.float32),
    }
    return actor, critic


def pack_params(actor, critic, action_size):
    """Fuse actor+critic params into 3 weights + one bias slab for the kernel."""
    S, Ha1 = actor["w1"].shape
    Ha2 = actor["w2"].shape[1]
    Hc1 = critic["w1"].shape[1]
    Hc2 = critic["w2"].shape[1]
    A = action_size
    H1, H2 = Ha1 + Hc1, Ha2 + Hc2
    H = max(H1, H2, A + 1)          # common fused width (zero-padded where needed)

    w1 = jnp.zeros((S, H), jnp.float32)
    w1 = w1.at[:, :Ha1].set(actor["w1"]).at[:, Ha1:H1].set(critic["w1"])

    w2 = jnp.zeros((H, H), jnp.float32)            # block diagonal
    w2 = w2.at[:Ha1, :Ha2].set(actor["w2"]).at[Ha1:H1, Ha2:H2].set(critic["w2"])

    w3 = jnp.zeros((H, H), jnp.float32)            # cols 0..A-1 = logits, col A = value
    w3 = w3.at[:Ha2, :A].set(actor["w3"]).at[Ha2:H2, A].set(critic["w3"][:, 0])

    bias = jnp.zeros((3, H), jnp.float32)
    bias = bias.at[0, :Ha1].set(actor["b1"]).at[0, Ha1:H1].set(critic["b1"])
    bias = bias.at[1, :Ha2].set(actor["b2"]).at[1, Ha2:H2].set(critic["b2"])
    bias = bias.at[2, :A].set(actor["b3"]).at[2, A].set(critic["b3"][0])

    return {"w1": w1, "w2": w2, "w3": w3, "bias": bias, "action_size": A}


# --------------------------------- Main ------------------------------------ #
if __name__ == "__main__":
    B = 8
    STATE_SIZE = 24
    ACTION_SIZE = 4
    H_ACTOR = (32, 32)
    H_CRITIC = (32, 32)

    key = jax.random.PRNGKey(0)
    k_state, k_params, k_sample = jax.random.split(key, 3)

    state = jax.random.normal(k_state, (B, STATE_SIZE), dtype=jnp.float32)
    actor_params, critic_params = make_params(
        k_params, STATE_SIZE, ACTION_SIZE, H_ACTOR, H_CRITIC
    )
    packed = pack_params(actor_params, critic_params, ACTION_SIZE)

    (action, log_prob, entropy), value = actor_critic_forward(state, packed, k_sample)
    jax.block_until_ready((action, log_prob, entropy, value))

    # --- shape / range sanity ---------------------------------------------- #
    assert action.shape == (B,) and action.dtype == jnp.int32
    assert log_prob.shape == (B,) and entropy.shape == (B,)
    assert value.shape == (B, 1)
    assert bool(jnp.all(action >= 0)) and bool(jnp.all(action < ACTION_SIZE))
    assert bool(jnp.all(log_prob <= 0.0))
    assert bool(jnp.all(entropy >= 0.0))

    # --- numeric cross-check against a pure-JAX reference (unfused params) -- #
    def ref_forward(x, ap, cp):
        h = jnp.maximum(x @ ap["w1"] + ap["b1"], 0.0)
        h = jnp.maximum(h @ ap["w2"] + ap["b2"], 0.0)
        logits = h @ ap["w3"] + ap["b3"]
        g = jnp.maximum(x @ cp["w1"] + cp["b1"], 0.0)
        g = jnp.maximum(g @ cp["w2"] + cp["b2"], 0.0)
        v = g @ cp["w3"] + cp["b3"]
        return logits, v

    logits_ref, value_ref = ref_forward(state, actor_params, critic_params)
    logp_ref = jax.nn.log_softmax(logits_ref, axis=-1)
    p_ref = jax.nn.softmax(logits_ref, axis=-1)
    ent_ref = -jnp.sum(p_ref * logp_ref, axis=-1)
    lp_at_action = jnp.take_along_axis(logp_ref, action[:, None], axis=1)[:, 0]

    assert bool(jnp.allclose(value, value_ref, atol=1e-4))
    assert bool(jnp.allclose(entropy, ent_ref, atol=1e-4))
    assert bool(jnp.allclose(log_prob, lp_at_action, atol=1e-4))

    print("KERNEL_OK")
</pallas_src>

<mosaic_0001>
module attributes {stable_mosaic.version = 11 : i64} {
  func.func @fused_actor_critic_kernel(%arg0: i32, %arg1: memref<8x24xf32, #tpu.memory_space<vmem>>, %arg2: memref<8x4xf32, #tpu.memory_space<vmem>>, %arg3: memref<24x64xf32, #tpu.memory_space<vmem>>, %arg4: memref<64x64xf32, #tpu.memory_space<vmem>>, %arg5: memref<64x64xf32, #tpu.memory_space<vmem>>, %arg6: memref<3x64xf32, #tpu.memory_space<vmem>>, %arg7: memref<8x128xf32, #tpu.memory_space<vmem>>) attributes {dimension_semantics = [#tpu.dimension_semantics<parallel>], iteration_bounds = array<i64: 1>, scalar_prefetch = 0 : i64, scratch_operands = 0 : i64, tpu.core_type = #tpu.core_type<tc>, window_params = [{transform_indices = @transform_0, window_bounds = array<i64: 8, 24>}, {transform_indices = @transform_1, window_bounds = array<i64: 8, 4>}, {pipeline_mode = #tpu.pipeline_mode<synchronous>, transform_indices = @transform_2, window_bounds = array<i64: 24, 64>}, {pipeline_mode = #tpu.pipeline_mode<synchronous>, transform_indices = @transform_3, window_bounds = array<i64: 64, 64>}, {pipeline_mode = #tpu.pipeline_mode<synchronous>, transform_indices = @transform_4, window_bounds = array<i64: 64, 64>}, {pipeline_mode = #tpu.pipeline_mode<synchronous>, transform_indices = @transform_5, window_bounds = array<i64: 3, 64>}, {transform_indices = @transform_6, window_bounds = array<i64: 8, 128>}]} {
    %c0 = arith.constant 0 : index
    %c0_0 = arith.constant 0 : index
    %0 = vector.load %arg1[%c0, %c0_0] : memref<8x24xf32, #tpu.memory_space<vmem>>, vector<8x24xf32>
    %c0_1 = arith.constant 0 : index
    %c0_2 = arith.constant 0 : index
    %1 = vector.load %arg6[%c0_1, %c0_2] : memref<3x64xf32, #tpu.memory_space<vmem>>, vector<3x64xf32>
    %c0_3 = arith.constant 0 : index
    %c0_4 = arith.constant 0 : index
    %2 = vector.load %arg3[%c0_3, %c0_4] : memref<24x64xf32, #tpu.memory_space<vmem>>, vector<24x64xf32>
    %cst = arith.constant dense<0.000000e+00> : vector<8x64xf32>
    %3 = tpu.matmul %0, %2, %cst {dimension_numbers = #tpu.dot_dimension_numbers<[1], [0], [0], [1], [0, 0, 1, 1], [], []>} : vector<8x24xf32>, vector<24x64xf32>, vector<8x64xf32> -> vector<8x64xf32>
    %4 = vector.extract_strided_slice %1 {offsets = [0, 0], sizes = [1, 64], strides = [1, 1]} : vector<3x64xf32> to vector<1x64xf32>
    %5 = vector.broadcast %4 : vector<1x64xf32> to vector<8x64xf32>
    %6 = arith.addf %3, %5 : vector<8x64xf32>
    %cst_5 = arith.constant 0.000000e+00 : f32
    %7 = vector.broadcast %cst_5 : f32 to vector<8x64xf32>
    %8 = arith.maximumf %6, %7 : vector<8x64xf32>
    %c0_6 = arith.constant 0 : index
    %c0_7 = arith.constant 0 : index
    %9 = vector.load %arg4[%c0_6, %c0_7] : memref<64x64xf32, #tpu.memory_space<vmem>>, vector<64x64xf32>
    %cst_8 = arith.constant dense<0.000000e+00> : vector<8x64xf32>
    %10 = tpu.matmul %8, %9, %cst_8 {dimension_numbers = #tpu.dot_dimension_numbers<[1], [0], [0], [1], [0, 0, 1, 1], [], []>} : vector<8x64xf32>, vector<64x64xf32>, vector<8x64xf32> -> vector<8x64xf32>
    %11 = vector.extract_strided_slice %1 {offsets = [1, 0], sizes = [1, 64], strides = [1, 1]} : vector<3x64xf32> to vector<1x64xf32>
    %12 = vector.broadcast %11 : vector<1x64xf32> to vector<8x64xf32>
    %13 = arith.addf %10, %12 : vector<8x64xf32>
    %cst_9 = arith.constant 0.000000e+00 : f32
    %14 = vector.broadcast %cst_9 : f32 to vector<8x64xf32>
    %15 = arith.maximumf %13, %14 : vector<8x64xf32>
    %c0_10 = arith.constant 0 : index
    %c0_11 = arith.constant 0 : index
    %16 = vector.load %arg5[%c0_10, %c0_11] : memref<64x64xf32, #tpu.memory_space<vmem>>, vector<64x64xf32>
    %cst_12 = arith.constant dense<0.000000e+00> : vector<8x64xf32>
    %17 = tpu.matmul %15, %16, %cst_12 {dimension_numbers = #tpu.dot_dimension_numbers<[1], [0], [0], [1], [0, 0, 1, 1], [], []>} : vector<8x64xf32>, vector<64x64xf32>, vector<8x64xf32> -> vector<8x64xf32>
    %18 = vector.extract_strided_slice %1 {offsets = [2, 0], sizes = [1, 64], strides = [1, 1]} : vector<3x64xf32> to vector<1x64xf32>
    %19 = vector.broadcast %18 : vector<1x64xf32> to vector<8x64xf32>
    %20 = arith.addf %17, %19 : vector<8x64xf32>
    %21 = vector.extract_strided_slice %20 {offsets = [0, 0], sizes = [8, 4], strides = [1, 1]} : vector<8x64xf32> to vector<8x4xf32>
    %22 = vector.extract_strided_slice %20 {offsets = [0, 4], sizes = [8, 1], strides = [1, 1]} : vector<8x64xf32> to vector<8x1xf32>
    %cst_13 = arith.constant dense<0xFF800000> : vector<8xf32>
    %23 = vector.multi_reduction <maximumf>, %21, %cst_13 [1] : vector<8x4xf32> to vector<8xf32>
    %24 = vector.shape_cast %23 : vector<8xf32> to vector<8x1xf32>
    %25 = vector.broadcast %24 : vector<8x1xf32> to vector<8x4xf32>
    %26 = arith.subf %21, %25 : vector<8x4xf32>
    %27 = math.exp %26 : vector<8x4xf32>
    %cst_14 = arith.constant dense<0.000000e+00> : vector<8xf32>
    %28 = vector.multi_reduction <add>, %27, %cst_14 [1] : vector<8x4xf32> to vector<8xf32>
    %29 = vector.shape_cast %28 : vector<8xf32> to vector<8x1xf32>
    %30 = vector.broadcast %29 : vector<8x1xf32> to vector<8x4xf32>
    %31 = arith.divf %27, %30 : vector<8x4xf32>
    %32 = math.log %29 : vector<8x1xf32>
    %33 = vector.broadcast %32 : vector<8x1xf32> to vector<8x4xf32>
    %34 = arith.subf %26, %33 : vector<8x4xf32>
    %c0_15 = arith.constant 0 : index
    %c0_16 = arith.constant 0 : index
    %35 = vector.load %arg2[%c0_15, %c0_16] : memref<8x4xf32, #tpu.memory_space<vmem>>, vector<8x4xf32>
    %36 = arith.addf %34, %35 : vector<8x4xf32>
    %37 = tpu.iota {dimensions = array<i32: 1>} : vector<8x4xi32>
    %cst_17 = arith.constant dense<0xFF800000> : vector<8xf32>
    %38 = vector.multi_reduction <maximumf>, %36, %cst_17 [1] : vector<8x4xf32> to vector<8xf32>
    %39 = vector.shape_cast %38 : vector<8xf32> to vector<8x1xf32>
    %40 = vector.broadcast %39 : vector<8x1xf32> to vector<8x4xf32>
    %41 = arith.cmpf oge, %36, %40 : vector<8x4xf32>
    %c-1_i32 = arith.constant -1 : i32
    %42 = vector.broadcast %c-1_i32 : i32 to vector<8x4xi32>
    %43 = arith.select %41, %37, %42 : vector<8x4xi1>, vector<8x4xi32>
    %cst_18 = arith.constant dense<-2147483648> : vector<8xi32>
    %44 = vector.multi_reduction <maxsi>, %43, %cst_18 [1] : vector<8x4xi32> to vector<8xi32>
    %45 = vector.shape_cast %44 : vector<8xi32> to vector<8x1xi32>
    %46 = vector.broadcast %45 : vector<8x1xi32> to vector<8x4xi32>
    %47 = arith.cmpi eq, %37, %46 : vector<8x4xi32>
    %cst_19 = arith.constant 0.000000e+00 : f32
    %48 = vector.broadcast %cst_19 : f32 to vector<8x4xf32>
    %49 = arith.select %47, %34, %48 : vector<8x4xi1>, vector<8x4xf32>
    %cst_20 = arith.constant dense<0.000000e+00> : vector<8xf32>
    %50 = vector.multi_reduction <add>, %49, %cst_20 [1] : vector<8x4xf32> to vector<8xf32>
    %51 = vector.shape_cast %50 : vector<8xf32> to vector<8x1xf32>
    %52 = arith.mulf %31, %34 : vector<8x4xf32>
    %cst_21 = arith.constant dense<0.000000e+00> : vector<8xf32>
    %53 = vector.multi_reduction <add>, %52, %cst_21 [1] : vector<8x4xf32> to vector<8xf32>
    %54 = vector.shape_cast %53 : vector<8xf32> to vector<8x1xf32>
    %cst_22 = arith.constant 0.000000e+00 : f32
    %55 = vector.broadcast %cst_22 : f32 to vector<8x1xf32>
    %56 = arith.subf %55, %54 : vector<8x1xf32>
    %57 = tpu.iota {dimensions = array<i32: 1>} : vector<8x128xi32>
    %58 = arith.sitofp %45 : vector<8x1xi32> to vector<8x1xf32>
    %c0_i32 = arith.constant 0 : i32
    %59 = vector.broadcast %c0_i32 : i32 to vector<8x128xi32>
    %60 = arith.cmpi eq, %57, %59 : vector<8x128xi32>
    %c1_i32 = arith.constant 1 : i32
    %61 = vector.broadcast %c1_i32 : i32 to vector<8x128xi32>
    %62 = arith.cmpi eq, %57, %61 : vector<8x128xi32>
    %c2_i32 = arith.constant 2 : i32
    %63 = vector.broadcast %c2_i32 : i32 to vector<8x128xi32>
    %64 = arith.cmpi eq, %57, %63 : vector<8x128xi32>
    %c3_i32 = arith.constant 3 : i32
    %65 = vector.broadcast %c3_i32 : i32 to vector<8x128xi32>
    %66 = arith.cmpi eq, %57, %65 : vector<8x128xi32>
    %cst_23 = arith.constant 0.000000e+00 : f32
    %67 = vector.shape_cast %22 : vector<8x1xf32> to vector<8x1xf32>
    %68 = vector.broadcast %67 : vector<8x1xf32> to vector<8x128xf32>
    %69 = vector.broadcast %cst_23 : f32 to vector<8x128xf32>
    %70 = arith.select %66, %68, %69 : vector<8x128xi1>, vector<8x128xf32>
    %71 = vector.shape_cast %56 : vector<8x1xf32> to vector<8x1xf32>
    %72 = vector.broadcast %71 : vector<8x1xf32> to vector<8x128xf32>
    %73 = arith.select %64, %72, %70 : vector<8x128xi1>, vector<8x128xf32>
    %74 = vector.shape_cast %51 : vector<8x1xf32> to vector<8x1xf32>
    %75 = vector.broadcast %74 : vector<8x1xf32> to vector<8x128xf32>
    %76 = arith.select %62, %75, %73 : vector<8x128xi1>, vector<8x128xf32>
    %77 = vector.shape_cast %58 : vector<8x1xf32> to vector<8x1xf32>
    %78 = vector.broadcast %77 : vector<8x1xf32> to vector<8x128xf32>
    %79 = arith.select %60, %78, %76 : vector<8x128xi1>, vector<8x128xf32>
    %c0_24 = arith.constant 0 : index
    %c0_25 = arith.constant 0 : index
    %80 = vector.load %arg7[%c0_24, %c0_25] : memref<8x128xf32, #tpu.memory_space<vmem>>, vector<8x128xf32>
    tpu.vector_store %arg7[%c0_24, %c0_25], %79 {strides = array<i32>} : memref<8x128xf32, #tpu.memory_space<vmem>>, vector<8x128xf32>,
    return
  }
  func.func @transform_0(%arg0: i32) -> (i32, i32) {
    %c0_i32 = arith.constant 0 : i32
    %c0_i32_0 = arith.constant 0 : i32
    return %arg0, %c0_i32 : i32, i32
  }
  func.func @transform_1(%arg0: i32) -> (i32, i32) {
    %c0_i32 = arith.constant 0 : i32
    %c0_i32_0 = arith.constant 0 : i32
    return %arg0, %c0_i32 : i32, i32
  }
  func.func @transform_2(%arg0: i32) -> (i32, i32) {
    %c0_i32 = arith.constant 0 : i32
    %c0_i32_0 = arith.constant 0 : i32
    %c0_i32_1 = arith.constant 0 : i32
    return %c0_i32, %c0_i32_0 : i32, i32
  }
  func.func @transform_3(%arg0: i32) -> (i32, i32) {
    %c0_i32 = arith.constant 0 : i32
    %c0_i32_0 = arith.constant 0 : i32
    %c0_i32_1 = arith.constant 0 : i32
    return %c0_i32, %c0_i32_0 : i32, i32
  }
  func.func @transform_4(%arg0: i32) -> (i32, i32) {
    %c0_i32 = arith.constant 0 : i32
    %c0_i32_0 = arith.constant 0 : i32
    %c0_i32_1 = arith.constant 0 : i32
    return %c0_i32, %c0_i32_0 : i32, i32
  }
  func.func @transform_5(%arg0: i32) -> (i32, i32) {
    %c0_i32 = arith.constant 0 : i32
    %c0_i32_0 = arith.constant 0 : i32
    %c0_i32_1 = arith.constant 0 : i32
    return %c0_i32, %c0_i32_0 : i32, i32
  }
  func.func @transform_6(%arg0: i32) -> (i32, i32) {
    %c0_i32 = arith.constant 0 : i32
    %c0_i32_0 = arith.constant 0 : i32
    return %arg0, %c0_i32 : i32, i32
  }
}

</mosaic_0001>

<llo_original>
// kernel: tpu_custom_call.1
$region0: #{tpu_custom_call.1}
  #allocation0 [shape = 'u32[]', space=smem, size = 0x4, offset = 0x4, fixed_abs, tag = 'smem constant byte address 0x4 - core index']
  #allocation1 [shape = 'u32[72,128]{1,0:T(1,128)}', space=vmem, size = 0x9000, scoped, tag = 'internal scratch']
  %s0 = inlined_call_operand.vmem [shape: f32[8,24], index: 0, kind: input, shape index: {}]
  %s1 = inlined_call_operand.vmem [shape: f32[8,4], index: 1, kind: input, shape index: {}]
  %s2 = inlined_call_operand.hbm [shape: f32[24,64], index: 2, kind: input, shape index: {}]
  %s3 = inlined_call_operand.hbm [shape: f32[64,64], index: 3, kind: input, shape index: {}]
  %s4 = inlined_call_operand.hbm [shape: f32[64,64], index: 4, kind: input, shape index: {}]
  %s5 = inlined_call_operand.vmem [shape: f32[3,64], index: 5, kind: input, shape index: {}]
  %s6 = inlined_call_operand.hbm [shape: f32[8,128], index: 6, kind: output, shape index: {}]
  %s7 = sld [smem:[#allocation0]]
  $region46: #{tpu_custom_call.1} parent=0
    _
  %s9 = ssub.s32 1, %s7
  %s10 = scalar_select 0, %s9, %s7
  $region1: #{tpu_custom_call.1} parent=0
    #allocation2 [shape = 'u8[12288]{0}', space=vmem, size = 0x3000, scoped, tag = 'input window, operand 2, single buffered']
    #allocation3 [shape = 's32[1]{0}', space=sflag, size = 0x4, scoped, tag = 'scoped memory for tpu_custom_call.1']
    #allocation4 [shape = 's32[1]{0}', space=sflag, size = 0x4, scoped, tag = 'scoped memory for tpu_custom_call.1']
    #allocation5 [shape = 'u8[32768]{0}', space=vmem, size = 0x8000, scoped, tag = 'input window, operand 3, single buffered']
    #allocation6 [shape = 's32[1]{0}', space=sflag, size = 0x4, scoped, tag = 'scoped memory for tpu_custom_call.1']
    #allocation7 [shape = 'u8[32768]{0}', space=vmem, size = 0x8000, scoped, tag = 'input window, operand 4, single buffered']
    #allocation8 [shape = 'u8[4096]{0}', space=vmem, size = 0x1000, scoped, tag = 'output window, operand 0, single buffered']
    %11 = vsyncpa [#allocation3], 0
    %12 = vsyncpa [#allocation6], 0
    %13 = vsyncpa [#allocation4], 0
    // Predicated region
    $region2: #{tpu_custom_call.1} parent=1 // pred_check
      _
    $region3: #{tpu_custom_call.1} parent=1 // pred_check_branch
      %15 = sbr.rel (0) target = $region5
    $region4: #{tpu_custom_call.1} parent=1 // pred_region
      _
    $region5: #{tpu_custom_call.1} parent=1 // pred_fallthru
      _
    // Predicated region
    $region6: #{tpu_custom_call.1} parent=1 // pred_check
      _
    $region7: #{tpu_custom_call.1} parent=1 // pred_check_branch
      %17 = sbr.rel (0) target = $region9
    $region8: #{tpu_custom_call.1} parent=1 // pred_region
      _
    $region9: #{tpu_custom_call.1} parent=1 // pred_fallthru
      _
    // Predicated region
    $region10: #{tpu_custom_call.1} parent=1 // pred_check
      _
    $region11: #{tpu_custom_call.1} parent=1 // pred_check_branch
      %19 = sbr.rel (0) target = $region13
    $region12: #{tpu_custom_call.1} parent=1 // pred_region
      %21 = vsyncadd [#allocation3], 0
      %s22 = sshll.u32 %s2, 4
      %s23 = int_to_ptr.hbm [resolvable:$true] %s22
      %s24 = sshll.u32 [#allocation2], 4
      %s25 = int_to_ptr.vmem [resolvable:$true] %s24
      %30 = dma.hbm_to_vmem [thread:$0]  %s23, 384, %s25, [#allocation3], 128, 128, 8
    $region13: #{tpu_custom_call.1} parent=1 // pred_fallthru
      _
    // Predicated region
    $region14: #{tpu_custom_call.1} parent=1 // pred_check
      _
    $region15: #{tpu_custom_call.1} parent=1 // pred_check_branch
      %32 = sbr.rel (0) target = $region17
    $region16: #{tpu_custom_call.1} parent=1 // pred_region
      %34 = vsyncadd [#allocation6], 0
      %s35 = sshll.u32 %s3, 4
      %s36 = int_to_ptr.hbm [resolvable:$true] %s35
      %s37 = sshll.u32 [#allocation5], 4
      %s38 = int_to_ptr.vmem [resolvable:$true] %s37
      %43 = dma.hbm_to_vmem [thread:$0]  %s36, 1024, %s38, [#allocation6], 128, 128, 8
    $region17: #{tpu_custom_call.1} parent=1 // pred_fallthru
      _
    // Predicated region
    $region18: #{tpu_custom_call.1} parent=1 // pred_check
      _
    $region19: #{tpu_custom_call.1} parent=1 // pred_check_branch
      %45 = sbr.rel (0) target = $region21
    $region20: #{tpu_custom_call.1} parent=1 // pred_region
      %47 = vsyncadd [#allocation6], 0
      %s48 = sshll.u32 %s4, 4
      %s49 = int_to_ptr.hbm [resolvable:$true] %s48
      %s50 = sshll.u32 [#allocation7], 4
      %s51 = int_to_ptr.vmem [resolvable:$true] %s50
      %56 = dma.hbm_to_vmem [thread:$0]  %s49, 1024, %s51, [#allocation6], 128, 128, 8
    $region21: #{tpu_custom_call.1} parent=1 // pred_fallthru
      _
    // Predicated region
    $region22: #{tpu_custom_call.1} parent=1 // pred_check
      _
    $region23: #{tpu_custom_call.1} parent=1 // pred_check_branch
      %58 = sbr.rel (0) target = $region25
    $region24: #{tpu_custom_call.1} parent=1 // pred_region
      _
    $region25: #{tpu_custom_call.1} parent=1 // pred_fallthru
      _
    // Predicated region
    $region26: #{tpu_custom_call.1} parent=1 // pred_check
      _
    $region27: #{tpu_custom_call.1} parent=1 // pred_check_branch
      %60 = sbr.rel (0) target = $region29
    $region28: #{tpu_custom_call.1} parent=1 // pred_region
      %62 = dma.done [#allocation3], 384
    $region29: #{tpu_custom_call.1} parent=1 // pred_fallthru
      _
    // Predicated region
    $region30: #{tpu_custom_call.1} parent=1 // pred_check
      _
    $region31: #{tpu_custom_call.1} parent=1 // pred_check_branch
      %64 = sbr.rel (0) target = $region33
    $region32: #{tpu_custom_call.1} parent=1 // pred_region
      %66 = dma.done [#allocation6], 1024
    $region33: #{tpu_custom_call.1} parent=1 // pred_fallthru
      _
    // Predicated region
    $region34: #{tpu_custom_call.1} parent=1 // pred_check
      _
    $region35: #{tpu_custom_call.1} parent=1 // pred_check_branch
      %68 = sbr.rel (0) target = $region37
    $region36: #{tpu_custom_call.1} parent=1 // pred_region
      %70 = dma.done [#allocation6], 1024
    $region37: #{tpu_custom_call.1} parent=1 // pred_fallthru
      _
    %v71 = vld [vmem:[%s0] sm:$0xff]
    %v72 = vld [vmem:[%s5] sm:$0x7]
    %v73 = vld [vmem:[#allocation2] sm:$0xff]
    %v74 = vld [vmem:[#allocation2 + $0x8] sm:$0xff]
    %v75 = vld [vmem:[#allocation2 + $0x10] sm:$0xff]
    %v76 = vperm.slane %v72, 0
    %vm77 = vcmask 195584
    %v79 = vsel %vm77, %v71, 0
    %81 = vmatpush.msra.mxu0 0.0
    %82 = vmatpush.msra.mxu0 0.0
    %83 = vmatpush.msra.mxu0 0.0
    %84 = vmatpush.msra.mxu0 0.0
    %85 = vmatpush.msra.mxu0 0.0
    %86 = vmatpush.msra.mxu0 0.0
    %87 = vmatpush.msra.mxu0 0.0
    %88 = vmatpush.msra.mxu0 0.0
    %89 = vmatpush.msra.mxu0 0.0
    %90 = vmatpush.msra.mxu0 0.0
    %91 = vmatpush.msra.mxu0 0.0
    %92 = vmatpush.msra.mxu0 0.0
    %93 = vmatpush.msra.mxu0 0.0
    %94 = vmatpush.msra.mxu0 %v75
    %95 = vmatpush.msra.mxu0 %v74
    %96 = vmatpush.msra.mxu0 %v73
    %97 = vmatmul.f32.gmra.mxu0 %v79
    %v98 = vpop.f32.mrf.mxu0
    %v99 = vadd.f32 %v76, %v98
    %100 = vdwg.mxu0
    %v101 = vmax.f32 %v99, 0.0
    %v102 = vld [vmem:[#allocation5] sm:$0xff]
    %v103 = vld [vmem:[#allocation5 + $0x8] sm:$0xff]
    %v104 = vld [vmem:[#allocation5 + $0x10] sm:$0xff]
    %v105 = vld [vmem:[#allocation5 + $0x18] sm:$0xff]
    %v106 = vld [vmem:[#allocation5 + $0x20] sm:$0xff]
    %v107 = vld [vmem:[#allocation5 + $0x28] sm:$0xff]
    %v108 = vld [vmem:[#allocation5 + $0x30] sm:$0xff]
    %v109 = vld [vmem:[#allocation5 + $0x38] sm:$0xff]
    %v110 = vperm.slane %v72, 1
    %vm111 = vcmask 523264
    %v113 = vsel %vm111, %v101, 0
    %115 = vmatpush.msra.mxu0 0.0
    %116 = vmatpush.msra.mxu0 0.0
    %117 = vmatpush.msra.mxu0 0.0
    %118 = vmatpush.msra.mxu0 0.0
    %119 = vmatpush.msra.mxu0 0.0
    %120 = vmatpush.msra.mxu0 0.0
    %121 = vmatpush.msra.mxu0 0.0
    %122 = vmatpush.msra.mxu0 0.0
    %123 = vmatpush.msra.mxu0 %v109
    %124 = vmatpush.msra.mxu0 %v108
    %125 = vmatpush.msra.mxu0 %v107
    %126 = vmatpush.msra.mxu0 %v106
    %127 = vmatpush.msra.mxu0 %v105
    %128 = vmatpush.msra.mxu0 %v104
    %129 = vmatpush.msra.mxu0 %v103
    %130 = vmatpush.msra.mxu0 %v102
    %131 = vmatmul.f32.gmra.mxu0 %v113
    %v132 = vpop.f32.mrf.mxu0
    %v133 = vadd.f32 %v110, %v132
    %134 = vdwg.mxu0
    %v135 = vmax.f32 %v133, 0.0
    %v136 = vld [vmem:[#allocation7] sm:$0xff]
    %v137 = vld [vmem:[#allocation7 + $0x8] sm:$0xff]
    %v138 = vld [vmem:[#allocation7 + $0x10] sm:$0xff]
    %v139 = vld [vmem:[#allocation7 + $0x18] sm:$0xff]
    %v140 = vld [vmem:[#allocation7 + $0x20] sm:$0xff]
    %v141 = vld [vmem:[#allocation7 + $0x28] sm:$0xff]
    %v142 = vld [vmem:[#allocation7 + $0x30] sm:$0xff]
    %v143 = vld [vmem:[#allocation7 + $0x38] sm:$0xff]
    %v144 = vperm.slane %v72, 2
    %v146 = vsel %vm111, %v135, 0
    %148 = vmatpush.msra.mxu0 0.0
    %149 = vmatpush.msra.mxu0 0.0
    %150 = vmatpush.msra.mxu0 0.0
    %151 = vmatpush.msra.mxu0 0.0
    %152 = vmatpush.msra.mxu0 0.0
    %153 = vmatpush.msra.mxu0 0.0
    %154 = vmatpush.msra.mxu0 0.0
    %155 = vmatpush.msra.mxu0 0.0
    %156 = vmatpush.msra.mxu0 %v143
    %157 = vmatpush.msra.mxu0 %v142
    %158 = vmatpush.msra.mxu0 %v141
    %159 = vmatpush.msra.mxu0 %v140
    %160 = vmatpush.msra.mxu0 %v139
    %161 = vmatpush.msra.mxu0 %v138
    %162 = vmatpush.msra.mxu0 %v137
    %163 = vmatpush.msra.mxu0 %v136
    %164 = vmatmul.f32.gmra.mxu0 %v146
    %v165 = vpop.f32.mrf.mxu0
    %v166 = vadd.f32 %v144, %v165
    %167 = vdwg.mxu0
    %vm168 = vcmask 31744
    %v169 = vsel %vm168, %v166, -inf
    %170 = vmax.xlane.f32.xlu0 %v169
    %v171 = vpop.xlane.xlu0 %170
    %v172 = vsub.f32 %v166, %v171
    %v173 = vmul.f32 %v172, 1.442695
    %v174 = vpow.pop %v173
    %v175 = vsel %vm168, %v174, 0.0
    %176 = vadd.xlane.f32.xlu0 %v175
    %v177 = vpop.xlane.xlu0 %176
    %v178 = vrcp.pop %v177
    %v179 = vmul.f32 %v177, %v178
    %v180 = vsub.f32 1.0, %v179
    %v181 = vmul.f32 %v178, %v180
    %v182 = vadd.f32 %v178, %v181
    %vm183 = vweird.f32 %v177
    %vm184 = vweird.f32 %v178
    %vm185 = vmor %vm183, %vm184
    %v186 = vsel %vm185, %v178, %v182
    %v187 = vand.u32 2147483647, %v177
    %vm188 = vcmp.eq.f32.partialorder %v187, 8.507059e+37
    %v189 = vand.u32 %v177, 2147483648
    %v190 = vor.u32 1.1754944e-38, %v189
    %v191 = vsel %vm188, %v190, %v186
    %v192 = vmul.f32 %v174, %v191
    %v193 = vlog2.pop %v177
    %v194 = vmul.f32 %v193, 0.6931472
    %v195 = vsub.f32 %v172, %v194
    %v196 = vld [vmem:[%s1] sm:$0xff]
    %v197 = vadd.f32 %v195, %v196
    %v198 = vlaneseq
    %v199 = vand.u32 %v198, 127
    %v200 = vsel %vm168, %v197, -inf
    %201 = vmax.xlane.f32.xlu0 %v200
    %v202 = vpop.xlane.xlu0 %201
    %vm203 = vcmp.ge.f32.partialorder %v197, %v202
    %v204 = vsel %vm203, %v199, 4294967295
    %v205 = vsel %vm168, %v204, 2147483648
    %v206 = vand.u32 %v205, 65535
    %v207 = vshra.s32 %v205, 16
    %v208 = vcvt.s32.f32 %v206
    %v209 = vcvt.s32.f32 %v207
    %210 = vmax.xlane.f32.xlu0 %v209
    %v211 = vpop.xlane.xlu0 %210
    %vm212 = vcmp.eq.f32.partialorder %v209, %v211
    %v213 = vsel %vm212, %v208, -inf
    %214 = vmax.xlane.f32.xlu0 %v213
    %v215 = vpop.xlane.xlu0 %214
    %v216 = vcvt.f32.s32 %v215
    %v217 = vcvt.f32.s32 %v211
    %v218 = vshll.u32 %v217, 16
    %v219 = vadd.s32 %v218, %v216
    %vm220 = vcmp.eq.s32.totalorder %v199, %v219
    %v221 = vsel %vm220, %v195, 0.0
    %v222 = vsel %vm168, %v221, 0.0
    %223 = vadd.xlane.f32.xlu0 %v222
    %v224 = vpop.xlane.xlu0 %223
    %v225 = vmul.f32 %v192, %v195
    %v226 = vsel %vm168, %v225, 0.0
    %227 = vadd.xlane.f32.xlu0 %v226
    %v228 = vpop.xlane.xlu0 %227
    %v229 = vsub.f32 0.0, %v228
    %v230 = vcvt.s32.f32 %v219
    %vm231 = vcmp.eq.s32.totalorder %v199, 0
    %vm232 = vcmp.eq.s32.totalorder %v199, 1
    %vm233 = vcmp.eq.s32.totalorder %v199, 2
    %vm234 = vcmp.eq.s32.totalorder %v199, 3
    %236 = vset.pattern.permute.xlu0 4
    %237 = vperm.xlu0 %236, %v166
    %v238 = vpop.permute.xlu0 %237
    %v240 = vsel %vm234, %v238, 0.0
    %v241 = vsel %vm233, %v229, %v240
    %v242 = vsel %vm232, %v224, %v241
    %v243 = vsel %vm231, %v230, %v242
    %244 = vst [vmem:[#allocation8] sm:$0xff] %v243
    // Predicated region
    $region38: #{tpu_custom_call.1} parent=1 // pred_check
      _
    $region39: #{tpu_custom_call.1} parent=1 // pred_check_branch
      %246 = sbr.rel (0) target = $region41
    $region40: #{tpu_custom_call.1} parent=1 // pred_region
      %248 = vsyncadd [#allocation4], 0
      %s250 = sshll.u32 [#allocation8], 4
      %s251 = int_to_ptr.vmem [resolvable:$true] %s250
      %s252 = sshll.u32 %s6, 4
      %s253 = int_to_ptr.hbm [resolvable:$true] %s252
      %255 = dma.vmem_to_hbm [thread:$0]  %s251, 128, %s253, [#allocation4]
    $region41: #{tpu_custom_call.1} parent=1 // pred_fallthru
      _
    // Predicated region
    $region42: #{tpu_custom_call.1} parent=1 // pred_check
      _
    $region43: #{tpu_custom_call.1} parent=1 // pred_check_branch
      %257 = sbr.rel (0) target = $region45
    $region44: #{tpu_custom_call.1} parent=1 // pred_region
      %259 = dma.done [#allocation4], 128
    $region45: #{tpu_custom_call.1} parent=1 // pred_fallthru
      _
    %260 = vsyncpa [#allocation3], 1
    %261 = vsyncpa [#allocation6], 1
    %262 = vsyncpa [#allocation4], 1

</llo_original>
